<compile_context>
chip_gen: v7x
topology: tpu7x:2x2x1
jax: 0.10.0
libtpu: 0.0.40
codegen_flags: <defaults>
</compile_context>

<pallas_src>
import jax
import jax.numpy as jnp
from jax import lax
from jax.experimental import pallas as pl
from jax.experimental.pallas import tpu as pltpu
import numpy as np

EPS = 1e-5
NEG_SLOPE = 0.01                       # nn.LeakyReLU default


def _round_up(x, m):
    return (x + m - 1) // m * m


def _phase_taps(K, s, pad):
    """For each output phase r in [0, s): taps (k, d) with (r + pad - k) % s == 0 and
    d = (r + pad - k) // s.  Output row oh = s*q + r is produced from input row ih = q + d."""
    per_phase = []
    d_all = set()
    for r in range(s):
        lst = []
        for k in range(K):
            if (r + pad - k) % s == 0:
                d = (r + pad - k) // s
                lst.append((k, d))
                d_all.add(d)
        per_phase.append(lst)
    return per_phase, sorted(d_all)


def _auto_lane_tile(R, KC, S2C, in_bytes, out_bytes, lane_tile):
    """Pick the lane tile L (128-multiple) and vmem_limit from the chip generation's VMEM."""
    R128 = _round_up(max(R, 1), 128)
    try:
        vmem_phys = int(pltpu.get_tpu_info().vmem_capacity_bytes)
    except Exception:
        vmem_phys = 64 * 1024 * 1024                      # conservative: v7x per-TC VMEM
    budget = (vmem_phys * 3) // 4                         # headroom for Mosaic internal scratch
    # w_t double-buffered + scale/shift (tiny).  TODO(synk): pipeline_mode=pl.Buffered(1) on the
    # constant-index operands would reclaim half of this; kept default-buffered for portability.
    fixed = 2 * S2C * KC * in_bytes + 4 * S2C * 4
    # per lane: patches block (x2 buffers) + output block (x2) + f32 dot temp.
    per_l = 2 * KC * in_bytes + 2 * S2C * out_bytes + S2C * 4
    l_fit = max(128, ((budget - fixed) // per_l) // 128 * 128)
    L = min(R128, l_fit)
    if lane_tile is not None:
        L = min(L, max(128, int(lane_tile) // 128 * 128))
    if R128 >= 256:
        # keep at least two grid steps so both v7x TensorCores get work on the parallel pass.
        L = min(L, max(128, (R128 // 2) // 128 * 128))
    R_pad = _round_up(R, L)
    n_tiles = R_pad // L
    need = fixed + per_l * L + (2 << 20)
    vmem_limit = int(min(max(need, 32 * 1024 * 1024), vmem_phys))
    return L, R_pad, n_tiles, vmem_limit


# ---------------------------- Pallas kernels ----------------------------

def _conv_stats_kernel(w_ref, p_ref, sum_ref, sumsq_ref):
    """Pass 1: conv tile + per-(phase,channel) sum and sum-of-squares.
    sum_ref / sumsq_ref are resident accumulators (constant index_map, written to HBM once).
    NOTE: the zero-padded tail lanes (R_pad > R) stay harmless ONLY because no additive term
    (bias etc.) is applied here: W @ 0 == 0 contributes nothing to either sum."""
    @pl.when(pl.program_id(0) == 0)
    def _():
        sum_ref[...] = jnp.zeros_like(sum_ref)
        sumsq_ref[...] = jnp.zeros_like(sumsq_ref)

    y = jnp.dot(w_ref[...], p_ref[...], preferred_element_type=jnp.float32)   # (S2C, L) f32
    sum_ref[...] += jnp.sum(y, axis=1, keepdims=True)
    sumsq_ref[...] += jnp.sum(y * y, axis=1, keepdims=True)


def _conv_bn_lrelu_kernel(w_ref, scale_ref, shift_ref, p_ref, out_ref):
    """Pass 2: recompute conv tile, fused BN affine (scale/shift) + LeakyReLU, lane-dense store."""
    y = jnp.dot(w_ref[...], p_ref[...], preferred_element_type=jnp.float32)   # (S2C, L) f32
    y = y * scale_ref[...] + shift_ref[...]
    out_ref[...] = jnp.where(y >= 0, y, NEG_SLOPE * y).astype(out_ref.dtype)


# ---------------------------- wrapper ----------------------------

def conv_trans_layer(x_nchw, weight, bias, gamma, beta, *, stride, pad=0, out_pad=0,
                     bn=True, lane_tile=None, compute_dtype=jnp.bfloat16,
                     out_dtype=jnp.float32):
    """Forward of ConvTransLayer.

    x_nchw: (N, Cin, H, W); weight: (Cin, Cout, KH, KW) (PyTorch ConvTranspose2d layout).
    With bn=True the conv bias is NOT applied (exact no-op against train-mode batch-norm).
    compute_dtype=bfloat16 quantizes MXU operands (documented accuracy trade-off);
    accumulation + BN/LeakyReLU epilogue are f32.  out_dtype=bfloat16 halves output traffic
    when the consumer tolerates it (default f32 matches the PyTorch module).
    """
    N, Cin, H, W = x_nchw.shape
    wCin, Cout, KH, KW = weight.shape
    assert wCin == Cin
    s = stride
    Hout = (H - 1) * s - 2 * pad + KH + out_pad
    Wout = (W - 1) * s - 2 * pad + KW + out_pad
    if Hout % s != 0 or Wout % s != 0:
        # TODO(synk): cropped-phase case (stride not dividing the output size) would need a
        # validity mask in the stats pass; not required for this module configuration.
        raise NotImplementedError("stride must divide the output spatial size")
    Hq, Wq = Hout // s, Wout // s

    ph_h, Dh = _phase_taps(KH, s, pad)
    ph_w, Dw = _phase_taps(KW, s, pad)
    nDh, nDw = len(Dh), len(Dw)
    KC = nDh * nDw * Cin            # fused contraction size
    S2C = s * s * Cout              # sub-pixel phases x output channels
    R = N * Hq * Wq

    in_b = jnp.dtype(compute_dtype).itemsize
    out_b = jnp.dtype(out_dtype).itemsize
    L, R_pad, n_tiles, vmem_limit = _auto_lane_tile(R, KC, S2C, in_b, out_b, lane_tile)

    # ---- glue: pad + im2col ONCE over the UNDILATED input. The input is pre-transposed to
    # (Cin, N, H, W) so the stacked slices reshape straight into (KC, R) with NO patches-sized
    # transpose (patches is ~nDh*nDw x larger than the input). ----
    x_t = jnp.transpose(x_nchw, (1, 0, 2, 3)).astype(compute_dtype)        # (Cin, N, H, W)
    lo_h = max(0, -Dh[0]); hi_h = max(0, Hq - 1 + Dh[-1] - (H - 1))
    lo_w = max(0, -Dw[0]); hi_w = max(0, Wq - 1 + Dw[-1] - (W - 1))
    xp = jnp.pad(x_t, ((0, 0), (0, 0), (lo_h, hi_h), (lo_w, hi_w)))
    cols = []
    for dh in Dh:
        for dw in Dw:
            cols.append(lax.slice(xp, (0, 0, lo_h + dh, lo_w + dw),
                                  (Cin, N, lo_h + dh + Hq, lo_w + dw + Wq)))
    patches = jnp.stack(cols, axis=0).reshape(KC, R)        # rows: (dh, dw, cin); lanes: (n, qh, qw)
    if R_pad != R:
        patches = jnp.pad(patches, ((0, 0), (0, R_pad - R)))

    # ---- glue: fused sub-pixel weight  W_big^T : (S2C, KC) ----
    w_f32 = weight.astype(jnp.float32)
    Wb = jnp.zeros((nDh, nDw, Cin, s, s, Cout), jnp.float32)
    for rh, taps_h in enumerate(ph_h):
        for (kh, dh) in taps_h:
            dh_i = Dh.index(dh)
            for rw, taps_w in enumerate(ph_w):
                for (kw, dw) in taps_w:
                    dw_i = Dw.index(dw)
                    Wb = Wb.at[dh_i, dw_i, :, rh, rw, :].set(w_f32[:, :, kh, kw])
    w_t = Wb.reshape(KC, S2C).T.astype(compute_dtype)        # (S2C, KC); rows: (rh, rw, cout)

    gemm_flops = 2 * S2C * KC * R_pad
    patch_bytes = KC * R_pad * in_b
    w_bytes = S2C * KC * in_b

    if bn:
        # ---- pass 1: conv + per-(phase,channel) sum / sumsq, accumulated in resident outputs ----
        sums, sumsqs = pl.pallas_call(
            _conv_stats_kernel,
            out_shape=(jax.ShapeDtypeStruct((S2C, 1), jnp.float32),
                       jax.ShapeDtypeStruct((S2C, 1), jnp.float32)),
            grid=(n_tiles,),
            in_specs=[pl.BlockSpec((S2C, KC), lambda t: (0, 0)),
                      pl.BlockSpec((KC, L), lambda t: (0, t))],
            out_specs=[pl.BlockSpec((S2C, 1), lambda t: (0, 0)),
                       pl.BlockSpec((S2C, 1), lambda t: (0, 0))],
            compiler_params=pltpu.CompilerParams(dimension_semantics=("arbitrary",),
                                                 vmem_limit_bytes=vmem_limit),
            cost_estimate=pl.CostEstimate(flops=gemm_flops, transcendentals=0,
                                          bytes_accessed=patch_bytes + w_bytes + 8 * S2C),
        )(w_t, patches)

        # ---- glue: finalize BN batch stats (biased variance), fold gamma/beta (tiny arrays) ----
        cnt = float(N * Hout * Wout)
        mean = sums[:, 0].reshape(s * s, Cout).sum(0) / cnt          # (Cout,)
        ex2 = sumsqs[:, 0].reshape(s * s, Cout).sum(0) / cnt
        var = jnp.maximum(ex2 - mean * mean, 0.0)                    # clamp f32 cancellation
        g = gamma.astype(jnp.float32) * lax.rsqrt(var + EPS)
        scale = jnp.tile(g, s * s).reshape(S2C, 1)
        shift = jnp.tile(beta.astype(jnp.float32) - mean * g, s * s).reshape(S2C, 1)
    else:
        scale = jnp.ones((S2C, 1), jnp.float32)
        shift = jnp.tile(bias.astype(jnp.float32), s * s).reshape(S2C, 1)

    # ---- pass 2: recompute conv tile, fused affine + LeakyReLU, lane-dense store ----
    y = pl.pallas_call(
        _conv_bn_lrelu_kernel,
        out_shape=jax.ShapeDtypeStruct((S2C, R_pad), out_dtype),
        grid=(n_tiles,),
        in_specs=[pl.BlockSpec((S2C, KC), lambda t: (0, 0)),
                  pl.BlockSpec((S2C, 1), lambda t: (0, 0)),
                  pl.BlockSpec((S2C, 1), lambda t: (0, 0)),
                  pl.BlockSpec((KC, L), lambda t: (0, t))],
        out_specs=pl.BlockSpec((S2C, L), lambda t: (0, t)),
        compiler_params=pltpu.CompilerParams(dimension_semantics=("parallel",),
                                             vmem_limit_bytes=vmem_limit),
        cost_estimate=pl.CostEstimate(
            flops=gemm_flops, transcendentals=0,
            bytes_accessed=patch_bytes + w_bytes + 8 * S2C + S2C * R_pad * out_b),
    )(w_t, scale, shift, patches)

    # ---- glue: pixel-shuffle back to NCHW (done at out_dtype; bf16 halves this traffic) ----
    # TODO(synk): folding the pixel-shuffle scatter into pass 2 would need strided lane stores;
    # kept as an XLA transpose on the (already lane-dense) kernel output.
    y = y[:, :R].reshape(s, s, Cout, N, Hq, Wq)
    y = y.transpose(3, 2, 4, 0, 5, 1).reshape(N, Cout, Hq * s, Wq * s)
    return y


def reference(x, weight, bias, gamma, beta, *, stride, pad, out_pad, bn=True):
    """Pure-JAX reference with identical semantics (correctness check)."""
    Cin, Cout, K, _ = weight.shape
    w_flip = jnp.transpose(weight, (1, 0, 2, 3))[:, :, ::-1, ::-1]   # (Cout, Cin, K, K)
    lo, hi = K - 1 - pad, K - 1 - pad + out_pad
    y = lax.conv_general_dilated(
        x.astype(jnp.float32), w_flip.astype(jnp.float32), window_strides=(1, 1),
        padding=[(lo, hi), (lo, hi)], lhs_dilation=(stride, stride),
        dimension_numbers=("NCHW", "OIHW", "NCHW"))
    y = y + bias[None, :, None, None]
    if bn:
        mean = y.mean(axis=(0, 2, 3), keepdims=True)
        var = ((y - mean) ** 2).mean(axis=(0, 2, 3), keepdims=True)
        y = (y - mean) / jnp.sqrt(var + EPS)
        y = y * gamma[None, :, None, None] + beta[None, :, None, None]
    return jnp.where(y >= 0, y, NEG_SLOPE * y)


if __name__ == "__main__":
    # ConvTransLayer(in_channels=4, out_channels=8, kernel=3, stride=2, pad=1, out_pad=1, bn=True)
    in_channels, out_channels, kernel, stride, pad, out_pad = 4, 8, 3, 2, 1, 1
    N, H, W = 2, 16, 16

    key = jax.random.PRNGKey(0)
    kx, kw, kb, kg, kbt = jax.random.split(key, 5)
    x = jax.random.normal(kx, (N, in_channels, H, W), jnp.float32)
    weight = jax.random.normal(kw, (in_channels, out_channels, kernel, kernel), jnp.float32) * 0.1
    bias = jax.random.normal(kb, (out_channels,), jnp.float32) * 0.1
    gamma = 1.0 + 0.1 * jax.random.normal(kg, (out_channels,), jnp.float32)
    beta = 0.1 * jax.random.normal(kbt, (out_channels,), jnp.float32)
    # TODO(synk): BatchNorm running-stat buffer updates are stateful and do not affect the
    # training-mode forward output, so they are not modeled here.

    Hout = (H - 1) * stride - 2 * pad + kernel + out_pad
    Wout = (W - 1) * stride - 2 * pad + kernel + out_pad
    ref = reference(x, weight, bias, gamma, beta, stride=stride, pad=pad, out_pad=out_pad)

    # Default path: bf16 MXU operands on all generations, auto lane tile (>= 2 grid steps).
    fwd = jax.jit(lambda xx, ww, bb, gg, bt: conv_trans_layer(
        xx, ww, bb, gg, bt, stride=stride, pad=pad, out_pad=out_pad))
    out = jax.block_until_ready(fwd(x, weight, bias, gamma, beta))
    assert out.shape == (N, out_channels, Hout, Wout)
    np.testing.assert_allclose(np.asarray(out), np.asarray(ref), rtol=5e-2, atol=5e-2)

    # f32 operands + small lane tile -> 4-step pipelined grid, tight correctness check.
    fwd_f32 = jax.jit(lambda xx, ww, bb, gg, bt: conv_trans_layer(
        xx, ww, bb, gg, bt, stride=stride, pad=pad, out_pad=out_pad,
        compute_dtype=jnp.float32, lane_tile=128))
    out_f32 = jax.block_until_ready(fwd_f32(x, weight, bias, gamma, beta))
    np.testing.assert_allclose(np.asarray(out_f32), np.asarray(ref), rtol=1e-3, atol=1e-3)

    # bn=False branch: ConvTranspose2d (with bias) -> LeakyReLU only.
    fwd_nobn = jax.jit(lambda xx, ww, bb: conv_trans_layer(
        xx, ww, bb, None, None, stride=stride, pad=pad, out_pad=out_pad,
        bn=False, compute_dtype=jnp.float32))
    out_nobn = jax.block_until_ready(fwd_nobn(x, weight, bias))
    ref_nobn = reference(x, weight, bias, gamma, beta, stride=stride, pad=pad,
                         out_pad=out_pad, bn=False)
    np.testing.assert_allclose(np.asarray(out_nobn), np.asarray(ref_nobn), rtol=1e-3, atol=1e-3)

    print("KERNEL_OK")
</pallas_src>

<mosaic_0001>
module attributes {stable_mosaic.version = 11 : i64} {
  func.func @_conv_stats_kernel(%arg0: i32, %arg1: memref<32x16xbf16, #tpu.memory_space<vmem>>, %arg2: memref<16x256xbf16, #tpu.memory_space<vmem>>, %arg3: memref<32x1xf32, #tpu.memory_space<vmem>>, %arg4: memref<32x1xf32, #tpu.memory_space<vmem>>) attributes {dimension_semantics = [#tpu.dimension_semantics<arbitrary>], iteration_bounds = array<i64: 2>, scalar_prefetch = 0 : i64, scratch_operands = 0 : i64, tpu.core_type = #tpu.core_type<tc>, window_params = [{pipeline_mode = #tpu.pipeline_mode<synchronous>, transform_indices = @transform_0, window_bounds = array<i64: 32, 16>}, {transform_indices = @transform_1, window_bounds = array<i64: 16, 256>}, {pipeline_mode = #tpu.pipeline_mode<synchronous>, transform_indices = @transform_2, window_bounds = array<i64: 32, 1>}, {pipeline_mode = #tpu.pipeline_mode<synchronous>, transform_indices = @transform_3, window_bounds = array<i64: 32, 1>}]} {
    %c0_i32 = arith.constant 0 : i32
    %0 = arith.cmpi eq, %arg0, %c0_i32 : i32
    %1 = arith.extui %0 : i1 to i32
    %c0_i32_0 = arith.constant 0 : i32
    %2 = arith.cmpi ne, %1, %c0_i32_0 : i32
    scf.if %2 {
      %cst_14 = arith.constant 0.000000e+00 : f32
      %17 = vector.broadcast %cst_14 : f32 to vector<32x1xf32>
      %c0_15 = arith.constant 0 : index
      %c0_16 = arith.constant 0 : index
      %18 = vector.load %arg3[%c0_15, %c0_16] : memref<32x1xf32, #tpu.memory_space<vmem>>, vector<32x1xf32>
      tpu.vector_store %arg3[%c0_15, %c0_16], %17 {strides = array<i32>} : memref<32x1xf32, #tpu.memory_space<vmem>>, vector<32x1xf32>,
      %cst_17 = arith.constant 0.000000e+00 : f32
      %19 = vector.broadcast %cst_17 : f32 to vector<32x1xf32>
      %c0_18 = arith.constant 0 : index
      %c0_19 = arith.constant 0 : index
      %20 = vector.load %arg4[%c0_18, %c0_19] : memref<32x1xf32, #tpu.memory_space<vmem>>, vector<32x1xf32>
      tpu.vector_store %arg4[%c0_18, %c0_19], %19 {strides = array<i32>} : memref<32x1xf32, #tpu.memory_space<vmem>>, vector<32x1xf32>,
    } else {
    }
    %c0 = arith.constant 0 : index
    %c0_1 = arith.constant 0 : index
    %3 = vector.load %arg1[%c0, %c0_1] : memref<32x16xbf16, #tpu.memory_space<vmem>>, vector<32x16xbf16>
    %c0_2 = arith.constant 0 : index
    %c0_3 = arith.constant 0 : index
    %4 = vector.load %arg2[%c0_2, %c0_3] : memref<16x256xbf16, #tpu.memory_space<vmem>>, vector<16x256xbf16>
    %cst = arith.constant dense<0.000000e+00> : vector<32x256xf32>
    %5 = tpu.matmul %3, %4, %cst {dimension_numbers = #tpu.dot_dimension_numbers<[1], [0], [0], [1], [0, 0, 1, 1], [], []>} : vector<32x16xbf16>, vector<16x256xbf16>, vector<32x256xf32> -> vector<32x256xf32>
    %c0_4 = arith.constant 0 : index
    %c0_5 = arith.constant 0 : index
    %6 = vector.load %arg3[%c0_4, %c0_5] : memref<32x1xf32, #tpu.memory_space<vmem>>, vector<32x1xf32>
    %cst_6 = arith.constant dense<0.000000e+00> : vector<32xf32>
    %7 = vector.multi_reduction <add>, %5, %cst_6 [1] : vector<32x256xf32> to vector<32xf32>
    %8 = vector.shape_cast %7 : vector<32xf32> to vector<32x1xf32>
    %9 = arith.addf %6, %8 : vector<32x1xf32>
    %c0_7 = arith.constant 0 : index
    %c0_8 = arith.constant 0 : index
    %10 = vector.load %arg3[%c0_7, %c0_8] : memref<32x1xf32, #tpu.memory_space<vmem>>, vector<32x1xf32>
    tpu.vector_store %arg3[%c0_7, %c0_8], %9 {strides = array<i32>} : memref<32x1xf32, #tpu.memory_space<vmem>>, vector<32x1xf32>,
    %c0_9 = arith.constant 0 : index
    %c0_10 = arith.constant 0 : index
    %11 = vector.load %arg4[%c0_9, %c0_10] : memref<32x1xf32, #tpu.memory_space<vmem>>, vector<32x1xf32>
    %12 = arith.mulf %5, %5 : vector<32x256xf32>
    %cst_11 = arith.constant dense<0.000000e+00> : vector<32xf32>
    %13 = vector.multi_reduction <add>, %12, %cst_11 [1] : vector<32x256xf32> to vector<32xf32>
    %14 = vector.shape_cast %13 : vector<32xf32> to vector<32x1xf32>
    %15 = arith.addf %11, %14 : vector<32x1xf32>
    %c0_12 = arith.constant 0 : index
    %c0_13 = arith.constant 0 : index
    %16 = vector.load %arg4[%c0_12, %c0_13] : memref<32x1xf32, #tpu.memory_space<vmem>>, vector<32x1xf32>
    tpu.vector_store %arg4[%c0_12, %c0_13], %15 {strides = array<i32>} : memref<32x1xf32, #tpu.memory_space<vmem>>, vector<32x1xf32>,
    return
  }
  func.func @transform_0(%arg0: i32) -> (i32, i32) {
    %c0_i32 = arith.constant 0 : i32
    %c0_i32_0 = arith.constant 0 : i32
    %c0_i32_1 = arith.constant 0 : i32
    return %c0_i32, %c0_i32_0 : i32, i32
  }
  func.func @transform_1(%arg0: i32) -> (i32, i32) {
    %c0_i32 = arith.constant 0 : i32
    %c0_i32_0 = arith.constant 0 : i32
    return %c0_i32, %arg0 : i32, i32
  }
  func.func @transform_2(%arg0: i32) -> (i32, i32) {
    %c0_i32 = arith.constant 0 : i32
    %c0_i32_0 = arith.constant 0 : i32
    %c0_i32_1 = arith.constant 0 : i32
    return %c0_i32, %c0_i32_0 : i32, i32
  }
  func.func @transform_3(%arg0: i32) -> (i32, i32) {
    %c0_i32 = arith.constant 0 : i32
    %c0_i32_0 = arith.constant 0 : i32
    %c0_i32_1 = arith.constant 0 : i32
    return %c0_i32, %c0_i32_0 : i32, i32
  }
}

module attributes {stable_mosaic.version = 11 : i64} {
  func.func @_conv_bn_lrelu_kernel(%arg0: i32, %arg1: memref<32x16xbf16, #tpu.memory_space<vmem>>, %arg2: memref<32x1xf32, #tpu.memory_space<vmem>>, %arg3: memref<32x1xf32, #tpu.memory_space<vmem>>, %arg4: memref<16x256xbf16, #tpu.memory_space<vmem>>, %arg5: memref<32x256xf32, #tpu.memory_space<vmem>>) attributes {dimension_semantics = [#tpu.dimension_semantics<parallel>], iteration_bounds = array<i64: 2>, scalar_prefetch = 0 : i64, scratch_operands = 0 : i64, tpu.core_type = #tpu.core_type<tc>, window_params = [{pipeline_mode = #tpu.pipeline_mode<synchronous>, transform_indices = @transform_0, window_bounds = array<i64: 32, 16>}, {pipeline_mode = #tpu.pipeline_mode<synchronous>, transform_indices = @transform_1, window_bounds = array<i64: 32, 1>}, {pipeline_mode = #tpu.pipeline_mode<synchronous>, transform_indices = @transform_2, window_bounds = array<i64: 32, 1>}, {transform_indices = @transform_3, window_bounds = array<i64: 16, 256>}, {transform_indices = @transform_4, window_bounds = array<i64: 32, 256>}]} {
    %c0 = arith.constant 0 : index
    %c0_0 = arith.constant 0 : index
    %0 = vector.load %arg1[%c0, %c0_0] : memref<32x16xbf16, #tpu.memory_space<vmem>>, vector<32x16xbf16>
    %c0_1 = arith.constant 0 : index
    %c0_2 = arith.constant 0 : index
    %1 = vector.load %arg4[%c0_1, %c0_2] : memref<16x256xbf16, #tpu.memory_space<vmem>>, vector<16x256xbf16>
    %cst = arith.constant dense<0.000000e+00> : vector<32x256xf32>
    %2 = tpu.matmul %0, %1, %cst {dimension_numbers = #tpu.dot_dimension_numbers<[1], [0], [0], [1], [0, 0, 1, 1], [], []>} : vector<32x16xbf16>, vector<16x256xbf16>, vector<32x256xf32> -> vector<32x256xf32>
    %c0_3 = arith.constant 0 : index
    %c0_4 = arith.constant 0 : index
    %3 = vector.load %arg2[%c0_3, %c0_4] : memref<32x1xf32, #tpu.memory_space<vmem>>, vector<32x1xf32>
    %4 = vector.broadcast %3 : vector<32x1xf32> to vector<32x256xf32>
    %5 = arith.mulf %2, %4 : vector<32x256xf32>
    %c0_5 = arith.constant 0 : index
    %c0_6 = arith.constant 0 : index
    %6 = vector.load %arg3[%c0_5, %c0_6] : memref<32x1xf32, #tpu.memory_space<vmem>>, vector<32x1xf32>
    %7 = vector.broadcast %6 : vector<32x1xf32> to vector<32x256xf32>
    %8 = arith.addf %5, %7 : vector<32x256xf32>
    %cst_7 = arith.constant 0.000000e+00 : f32
    %9 = vector.broadcast %cst_7 : f32 to vector<32x256xf32>
    %10 = arith.cmpf oge, %8, %9 : vector<32x256xf32>
    %cst_8 = arith.constant 0.00999999977 : f32
    %11 = vector.broadcast %cst_8 : f32 to vector<32x256xf32>
    %12 = arith.mulf %11, %8 : vector<32x256xf32>
    %13 = arith.select %10, %8, %12 : vector<32x256xi1>, vector<32x256xf32>
    %c0_9 = arith.constant 0 : index
    %c0_10 = arith.constant 0 : index
    %14 = vector.load %arg5[%c0_9, %c0_10] : memref<32x256xf32, #tpu.memory_space<vmem>>, vector<32x256xf32>
    tpu.vector_store %arg5[%c0_9, %c0_10], %13 {strides = array<i32>} : memref<32x256xf32, #tpu.memory_space<vmem>>, vector<32x256xf32>,
    return
  }
  func.func @transform_0(%arg0: i32) -> (i32, i32) {
    %c0_i32 = arith.constant 0 : i32
    %c0_i32_0 = arith.constant 0 : i32
    %c0_i32_1 = arith.constant 0 : i32
    return %c0_i32, %c0_i32_0 : i32, i32
  }
  func.func @transform_1(%arg0: i32) -> (i32, i32) {
    %c0_i32 = arith.constant 0 : i32
    %c0_i32_0 = arith.constant 0 : i32
    %c0_i32_1 = arith.constant 0 : i32
    return %c0_i32, %c0_i32_0 : i32, i32
  }
  func.func @transform_2(%arg0: i32) -> (i32, i32) {
    %c0_i32 = arith.constant 0 : i32
    %c0_i32_0 = arith.constant 0 : i32
    %c0_i32_1 = arith.constant 0 : i32
    return %c0_i32, %c0_i32_0 : i32, i32
  }
  func.func @transform_3(%arg0: i32) -> (i32, i32) {
    %c0_i32 = arith.constant 0 : i32
    %c0_i32_0 = arith.constant 0 : i32
    return %c0_i32, %arg0 : i32, i32
  }
  func.func @transform_4(%arg0: i32) -> (i32, i32) {
    %c0_i32 = arith.constant 0 : i32
    %c0_i32_0 = arith.constant 0 : i32
    return %c0_i32, %arg0 : i32, i32
  }
}

</mosaic_0001>

<llo_original>
// kernel: squeeze.20
$region0: #{squeeze.20}
  %s0 = inlined_call_operand.vmem [shape: f32[32], index: 0, kind: input, shape index: {}]
  %s1 = inlined_call_operand.vmem [shape: f32[4,8], index: 1, kind: output, shape index: {}]
  $region1: #{squeeze.20} parent=0
    #allocation0 [shape = 'u8[4096]{0}', space=vmem, size = 0x1000, scoped, tag = 'scoped mem for output reshape']
    #allocation1 [shape = 'u8[4096]{0}', space=vmem, size = 0x1000, scoped, tag = 'scoped mem for input reshape']
    %s3 = sshllo.u32 0, 1
    %v4 = vld [vmem:[%s0] sm:%s3]
    %5 = vst [vmem:[#allocation1] sm:%s3] %v4
    %v6 = vld [vmem:[#allocation1] sm:$0x1]
    %vm7 = vcmask 64512
    %8 = vst.msk [vmem:[#allocation0] sm:$0x1] %vm7, %v6
    %v9 = vld [vmem:[#allocation1] sm:$0x1]
    %10 = vrot.lane.b32.xlu0 %v9, 120
    %v11 = vpop.permute.xlu0 %10
    %vm12 = vcmask 64512
    %s13 = scalar_lea.vmem [#allocation0], 1
    %14 = vst.msk [vmem:[%s13] sm:$0x1] %vm12, %v11
    %v15 = vld [vmem:[#allocation1] sm:$0x1]
    %16 = vrot.lane.b32.xlu0 %v15, 112
    %v17 = vpop.permute.xlu0 %16
    %vm18 = vcmask 64512
    %s19 = scalar_lea.vmem [#allocation0], 2
    %20 = vst.msk [vmem:[%s19] sm:$0x1] %vm18, %v17
    %v21 = vld [vmem:[#allocation1] sm:$0x1]
    %22 = vrot.lane.b32.xlu0 %v21, 104
    %v23 = vpop.permute.xlu0 %22
    %vm24 = vcmask 64512
    %s25 = scalar_lea.vmem [#allocation0], 3
    %26 = vst.msk [vmem:[%s25] sm:$0x1] %vm24, %v23
    %s28 = sshllo.u32 0, 4
    %v30 = vld [vmem:[#allocation0] sm:%s28]
    %s31 = sshllo.u32 0, 4
    %32 = vst [vmem:[%s1] sm:%s31] %v30

// kernel: tile.18
$region0: #{tile.18}
  #allocation0 [shape = 's32[1]{0}', space=sflag, size = 0x4, scoped, tag = 'scoped memory for tile.18']
  %s0 = inlined_call_operand.vmem [shape: f32[8], index: 0, kind: input, shape index: {}]
  %s1 = inlined_call_operand.vmem [shape: f32[4,8], index: 1, kind: output, shape index: {}]
  // Predicated region
  $region2: #{tile.18} parent=0 // pred_check
    _
  $region3: #{tile.18} parent=0 // pred_check_branch
    %3 = sbr.rel (0) target = $region5
  $region4: #{tile.18} parent=0 // pred_region
    _
  $region5: #{tile.18} parent=0 // pred_fallthru
    _
  %v4 = vld [vmem:[%s0] ss:$0 sm:$0xff]
  %5 = vst [vmem:[%s1] sm:$0xf] %v4

// kernel: tile.0
$region0: #{tile.0}
  %s0 = inlined_call_operand.vmem [shape: f32[4,8], index: 0, kind: input, shape index: {}]
  %s1 = inlined_call_operand.vmem [shape: f32[32,1], index: 1, kind: output, shape index: {}]
  $region1: #{tile.0} parent=0
    #allocation0 [shape = 'u8[4096]{0}', space=vmem, size = 0x1000, scoped, tag = 'scoped mem for input reshape']
    %s3 = sshllo.u32 0, 4
    %v4 = vld [vmem:[%s0] sm:%s3]
    %5 = vst [vmem:[#allocation0] sm:%s3] %v4
    %v6 = vld [vmem:[#allocation0] sm:$0xf]
    %vm7 = vcmask 7168
    %8 = vst.msk [vmem:[%s1] ss:$8 sm:$0xf] %vm7, %v6
    %v9 = vld [vmem:[#allocation0] sm:$0xf]
    %10 = vrot.lane.b32.xlu0 %v9, 127
    %v11 = vpop.permute.xlu0 %10
    %vm12 = vcmask 7168
    %s13 = scalar_lea.vmem %s1, 1
    %14 = vst.msk [vmem:[%s13] ss:$8 sm:$0xf] %vm12, %v11
    %v15 = vld [vmem:[#allocation0] sm:$0xf]
    %16 = vrot.lane.b32.xlu0 %v15, 126
    %v17 = vpop.permute.xlu0 %16
    %vm18 = vcmask 7168
    %s19 = scalar_lea.vmem %s1, 2
    %20 = vst.msk [vmem:[%s19] ss:$8 sm:$0xf] %vm18, %v17
    %v21 = vld [vmem:[#allocation0] sm:$0xf]
    %22 = vrot.lane.b32.xlu0 %v21, 125
    %v23 = vpop.permute.xlu0 %22
    %vm24 = vcmask 7168
    %s25 = scalar_lea.vmem %s1, 3
    %26 = vst.msk [vmem:[%s25] ss:$8 sm:$0xf] %vm24, %v23
    %v27 = vld [vmem:[#allocation0] sm:$0xf]
    %28 = vrot.lane.b32.xlu0 %v27, 124
    %v29 = vpop.permute.xlu0 %28
    %vm30 = vcmask 7168
    %s31 = scalar_lea.vmem %s1, 4
    %32 = vst.msk [vmem:[%s31] ss:$8 sm:$0xf] %vm30, %v29
    %v33 = vld [vmem:[#allocation0] sm:$0xf]
    %34 = vrot.lane.b32.xlu0 %v33, 123
    %v35 = vpop.permute.xlu0 %34
    %vm36 = vcmask 7168
    %s37 = scalar_lea.vmem %s1, 5
    %38 = vst.msk [vmem:[%s37] ss:$8 sm:$0xf] %vm36, %v35
    %v39 = vld [vmem:[#allocation0] sm:$0xf]
    %40 = vrot.lane.b32.xlu0 %v39, 122
    %v41 = vpop.permute.xlu0 %40
    %vm42 = vcmask 7168
    %s43 = scalar_lea.vmem %s1, 6
    %44 = vst.msk [vmem:[%s43] ss:$8 sm:$0xf] %vm42, %v41
    %v45 = vld [vmem:[#allocation0] sm:$0xf]
    %46 = vrot.lane.b32.xlu0 %v45, 121
    %v47 = vpop.permute.xlu0 %46
    %vm48 = vcmask 7168
    %s49 = scalar_lea.vmem %s1, 7
    %50 = vst.msk [vmem:[%s49] ss:$8 sm:$0xf] %vm48, %v47

// kernel: _lambda_.3
$region0: #{_lambda_.3}
  #allocation0 [shape = 'u32[]', space=smem, size = 0x4, offset = 0x4, fixed_abs, tag = 'smem constant byte address 0x4 - core index']
  #allocation1 [shape = 'u32[144,128]{1,0:T(1,128)}', space=vmem, size = 0x12000, scoped, tag = 'internal scratch']
  %s0 = inlined_call_operand.vmem [shape: bf16[32,16], index: 0, kind: input, shape index: {}]
  %s1 = inlined_call_operand.vmem [shape: f32[32,1], index: 1, kind: input, shape index: {}]
  %s2 = inlined_call_operand.vmem [shape: f32[32,1], index: 2, kind: input, shape index: {}]
  %s3 = inlined_call_operand.vmem [shape: bf16[16,512], index: 3, kind: input, shape index: {}]
  %s4 = inlined_call_operand.vmem [shape: f32[32,512], index: 4, kind: output, shape index: {}]
  %s5 = sld [smem:[#allocation0]]
  $region106: #{_lambda_.3} parent=0
    _
  %s7 = ssub.s32 1, %s5
  %s8 = scalar_select 0, %s7, %s5
  $region1: #{_lambda_.3} parent=0
    #allocation2 [shape = 'u8[16384]{0}', space=vmem, size = 0x4000, scoped, tag = 'input window, operand 3']
    #allocation3 [shape = 'u8[65536]{0}', space=vmem, size = 0x10000, scoped, tag = 'output window, operand 0']
    loop: start=0, step=1, limit=4
    $region2: #{_lambda_.3} parent=1 // loop_pre_header
      _
    $region3: #{_lambda_.3} parent=1 // loop_header
      %s10 = sphi 0, %s14
      %p11 = scmp.ge.s32.totalorder %s10, 4
      %s18 = sphi 0, %s18
      %s20 = sphi 0, %s18
      %s21 = sphi 0, %s20
      %s35 = sphi 0, %s21
      %s39 = sphi 0, %s39
      %s41 = sphi 0, %s39
      %s42 = sphi 0, %s41
      %s56 = sphi 0, %s42
      %s60 = sphi 0, %s60
      %s62 = sphi 0, %s60
      %s63 = sphi 0, %s62
      %s77 = sphi 0, %s63
      %s83 = sphi 0, %s85
      %s86 = sphi 0, %s83
      %s87 = sphi 0, %s86
      %s103 = sphi 0, %s87
      %s109 = sphi 0, %s111
      %s112 = sphi 0, %s109
      %s113 = sphi 0, %s112
      %s129 = sphi 0, %s113
    $region4: #{_lambda_.3} parent=1 // loop_header_branch
      %13 = sbr.rel (%p11) target = $region8
    $region5: #{_lambda_.3} parent=1 // loop_body
      %s15 = ssub.s32 %s10, 1
      %s16 = ssub.s32 %s10, 2
      %s17 = sadd.s32 %s10, 1
      %s19 = sadd.s32 %s18, 1
      %p22 = scmp.eq.s32.totalorder %s10, 1
      %p23 = scmp.ne.s32.totalorder %s18, %s20
      %p24 = scmp.eq.s32.totalorder %s10, 0
      %p25 = por %p23, %p24
      %p26 = scmp.ne.s32.totalorder %s18, %s20
      %p27 = scmp.eq.s32.totalorder %s15, 1
      %p28 = por %p26, %p27
      %p29 = scmp.ne.s32.totalorder %s20, %s21
      %p30 = scmp.eq.s32.totalorder %s15, 0
      %p31 = por %p29, %p30
      %p32 = scmp.ne.s32.totalorder %s20, %s21
      %p33 = scmp.eq.s32.totalorder %s16, 1
      %p34 = por %p32, %p33
      %p36 = scmp.ne.s32.totalorder %s21, %s35
      %p37 = scmp.eq.s32.totalorder %s16, 0
      %p38 = por %p36, %p37
      %s40 = sadd.s32 %s39, 1
      %p43 = scmp.eq.s32.totalorder %s10, 1
      %p44 = scmp.ne.s32.totalorder %s39, %s41
      %p45 = scmp.eq.s32.totalorder %s10, 0
      %p46 = por %p44, %p45
      %p47 = scmp.ne.s32.totalorder %s39, %s41
      %p48 = scmp.eq.s32.totalorder %s15, 1
      %p49 = por %p47, %p48
      %p50 = scmp.ne.s32.totalorder %s41, %s42
      %p51 = scmp.eq.s32.totalorder %s15, 0
      %p52 = por %p50, %p51
      %p53 = scmp.ne.s32.totalorder %s41, %s42
      %p54 = scmp.eq.s32.totalorder %s16, 1
      %p55 = por %p53, %p54
      %p57 = scmp.ne.s32.totalorder %s42, %s56
      %p58 = scmp.eq.s32.totalorder %s16, 0
      %p59 = por %p57, %p58
      %s61 = sadd.s32 %s60, 1
      %p64 = scmp.eq.s32.totalorder %s10, 1
      %p65 = scmp.ne.s32.totalorder %s60, %s62
      %p66 = scmp.eq.s32.totalorder %s10, 0
      %p67 = por %p65, %p66
      %p68 = scmp.ne.s32.totalorder %s60, %s62
      %p69 = scmp.eq.s32.totalorder %s15, 1
      %p70 = por %p68, %p69
      %p71 = scmp.ne.s32.totalorder %s62, %s63
      %p72 = scmp.eq.s32.totalorder %s15, 0
      %p73 = por %p71, %p72
      %p74 = scmp.ne.s32.totalorder %s62, %s63
      %p75 = scmp.eq.s32.totalorder %s16, 1
      %p76 = por %p74, %p75
      %p78 = scmp.ne.s32.totalorder %s63, %s77
      %p79 = scmp.eq.s32.totalorder %s16, 0
      %p80 = por %p78, %p79
      %s81 = ssub.s32 %s10, %s17
      %p82 = scmp.eq.s32.totalorder %s81, 0
      %s84 = sadd.s32 %s83, 1
      %s85 = scalar_select %p82, %s83, %s84
      %p88 = pneg %p82
      %p89 = scmp.eq.s32.totalorder %s10, 1
      %p90 = por %p88, %p89
      %p91 = scmp.ne.s32.totalorder %s83, %s86
      %p92 = scmp.eq.s32.totalorder %s10, 0
      %p93 = por %p91, %p92
      %p94 = scmp.ne.s32.totalorder %s83, %s86
      %p95 = scmp.eq.s32.totalorder %s15, 1
      %p96 = por %p94, %p95
      %p97 = scmp.ne.s32.totalorder %s86, %s87
      %p98 = scmp.eq.s32.totalorder %s15, 0
      %p99 = por %p97, %p98
      %p100 = scmp.ne.s32.totalorder %s86, %s87
      %p101 = scmp.eq.s32.totalorder %s16, 1
      %p102 = por %p100, %p101
      %p104 = scmp.ne.s32.totalorder %s87, %s103
      %p105 = scmp.eq.s32.totalorder %s16, 0
      %p106 = por %p104, %p105
      %s107 = ssub.s32 %s10, %s17
      %p108 = scmp.eq.s32.totalorder %s107, 0
      %s110 = sadd.s32 %s109, 1
      %s111 = scalar_select %p108, %s109, %s110
      %p114 = pneg %p108
      %p115 = scmp.eq.s32.totalorder %s10, 1
      %p116 = por %p114, %p115
      %p117 = scmp.ne.s32.totalorder %s109, %s112
      %p118 = scmp.eq.s32.totalorder %s10, 0
      %p119 = por %p117, %p118
      %p120 = scmp.ne.s32.totalorder %s109, %s112
      %p121 = scmp.eq.s32.totalorder %s15, 1
      %p122 = por %p120, %p121
      %p123 = scmp.ne.s32.totalorder %s112, %s113
      %p124 = scmp.eq.s32.totalorder %s15, 0
      %p125 = por %p123, %p124
      %p126 = scmp.ne.s32.totalorder %s112, %s113
      %p127 = scmp.eq.s32.totalorder %s16, 1
      %p128 = por %p126, %p127
      %p130 = scmp.ne.s32.totalorder %s113, %s129
      %p131 = scmp.eq.s32.totalorder %s16, 0
      %p132 = por %p130, %p131
      %p133 = scmp.le.s32.totalorder 1, %s10
      %p134 = scmp.lt.s32.totalorder %s10, 3
      %p135 = pnand %p133, %p134
      %p136 = pneg %p135
      // Predicated region
      $region9: #{_lambda_.3} parent=5 // pred_check
        _
      $region10: #{_lambda_.3} parent=5 // pred_check_branch
        %138 = sbr.rel (%p135) target = $region12
      $region11: #{_lambda_.3} parent=5 // pred_region
        %s139 = ssub.s32 %s10, 1
        // Predicated region
        $region13: #{_lambda_.3} parent=11 // pred_check
          %p140 = pneg %p31
        $region14: #{_lambda_.3} parent=11 // pred_check_branch
          %142 = sbr.rel (%p140) target = $region16
        $region15: #{_lambda_.3} parent=11 // pred_region
          _
        $region16: #{_lambda_.3} parent=11 // pred_fallthru
          _
        // Predicated region
        $region17: #{_lambda_.3} parent=11 // pred_check
          %p143 = pneg %p52
        $region18: #{_lambda_.3} parent=11 // pred_check_branch
          %145 = sbr.rel (%p143) target = $region20
        $region19: #{_lambda_.3} parent=11 // pred_region
          _
        $region20: #{_lambda_.3} parent=11 // pred_fallthru
          _
        // Predicated region
        $region21: #{_lambda_.3} parent=11 // pred_check
          %p146 = pneg %p73
        $region22: #{_lambda_.3} parent=11 // pred_check_branch
          %148 = sbr.rel (%p146) target = $region24
        $region23: #{_lambda_.3} parent=11 // pred_region
          _
        $region24: #{_lambda_.3} parent=11 // pred_fallthru
          _
      $region12: #{_lambda_.3} parent=5 // pred_fallthru
        _
      %p149 = scmp.lt.s32.totalorder %s10, 2
      // Predicated region
      $region25: #{_lambda_.3} parent=5 // pred_check
        %p150 = pneg %p149
      $region26: #{_lambda_.3} parent=5 // pred_check_branch
        %152 = sbr.rel (%p150) target = $region28
      $region27: #{_lambda_.3} parent=5 // pred_region
        // Predicated region
        $region29: #{_lambda_.3} parent=27 // pred_check
          %p153 = pneg %p93
        $region30: #{_lambda_.3} parent=27 // pred_check_branch
          %155 = sbr.rel (%p153) target = $region32
        $region31: #{_lambda_.3} parent=27 // pred_region
          %s156 = sand.u32 %s83, 1
          %s157 = sand.u32 %s83, 1
          %s158 = smul.addr %s157, 16
          %s159 = scalar_lea.vmem [#allocation2], %s158
          %s160 = smul.u32 2, %s10
          %s161 = smul.addr %s160, 4
          %s162 = scalar_lea.vmem %s3, %s161
          // Predicated region
          $region33: #{_lambda_.3} parent=31 // pred_check
            _
          $region34: #{_lambda_.3} parent=31 // pred_check_branch
            %164 = sbr.rel (0) target = $region36
          $region35: #{_lambda_.3} parent=31 // pred_region
            // Predicated region
            $region37: #{_lambda_.3} parent=35 // pred_check
              _
            $region38: #{_lambda_.3} parent=35 // pred_check_branch
              %166 = sbr.rel (0) target = $region40
            $region39: #{_lambda_.3} parent=35 // pred_region
              // Predicated region
              $region52: #{_lambda_.3} parent=39 // pred_check
                _
              $region53: #{_lambda_.3} parent=39 // pred_check_branch
                %183 = sbr.rel (0) target = $region55
              $region54: #{_lambda_.3} parent=39 // pred_region
                loop: start=0, step=1, limit=1
                $region56: #{_lambda_.3} parent=54 // loop_pre_header
                  _
                $region57: #{_lambda_.3} parent=54 // loop_header
                  %s185 = sphi 0, %s189
                  %p186 = scmp.ge.s32.totalorder %s185, 1
                  %s190 = sphi %s162, %s162
                  %s191 = sphi %s159, %s159
                $region58: #{_lambda_.3} parent=54 // loop_header_branch
                  %188 = sbr.rel (%p186) target = $region62
                $region59: #{_lambda_.3} parent=54 // loop_body
                  %v192 = vld [vmem:[%s190] sm:$0xff]
                  %193 = vst [vmem:[%s191] sm:$0xff] %v192
                  %v194 = vld [vmem:[%s190 + $0x10] sm:$0xff]
                  %195 = vst [vmem:[%s191 + $0x8] sm:$0xff] %v194
                $region60: #{_lambda_.3} parent=54 // loop_footer
                  %s189 = sadd.s32 1, %s185
                $region61: #{_lambda_.3} parent=54 // loop_footer_branch
                  %184 = sbr.rel target = $region57
                $region62: #{_lambda_.3} parent=54 // loop_exit
                  _
              $region55: #{_lambda_.3} parent=39 // pred_fallthru
                _
              // Predicated region
              $region63: #{_lambda_.3} parent=39 // pred_check
                _
              $region64: #{_lambda_.3} parent=39 // pred_check_branch
                %197 = sbr.rel target = $region66
              $region65: #{_lambda_.3} parent=39 // pred_region
                _
              $region66: #{_lambda_.3} parent=39 // pred_fallthru
                _
            $region40: #{_lambda_.3} parent=35 // pred_fallthru
              _
            // Predicated region
            $region41: #{_lambda_.3} parent=35 // pred_check
              _
            $region42: #{_lambda_.3} parent=35 // pred_check_branch
              %168 = sbr.rel target = $region44
            $region43: #{_lambda_.3} parent=35 // pred_region
              loop: start=0, step=1, limit=1
              $region45: #{_lambda_.3} parent=43 // loop_pre_header
                _
              $region46: #{_lambda_.3} parent=43 // loop_header
                %s171 = sphi 0, %s175
                %p172 = scmp.ge.s32.totalorder %s171, 1
                %s176 = sphi %s162, %s162
                %s177 = sphi %s159, %s159
              $region47: #{_lambda_.3} parent=43 // loop_header_branch
                %174 = sbr.rel (%p172) target = $region51
              $region48: #{_lambda_.3} parent=43 // loop_body
                %v178 = vld [vmem:[%s176] sm:$0xff]
                %179 = vst [vmem:[%s177] sm:$0xff] %v178
                %v180 = vld [vmem:[%s176 + $0x10] sm:$0xff]
                %181 = vst [vmem:[%s177 + $0x8] sm:$0xff] %v180
              $region49: #{_lambda_.3} parent=43 // loop_footer
                %s175 = sadd.s32 1, %s171
              $region50: #{_lambda_.3} parent=43 // loop_footer_branch
                %170 = sbr.rel target = $region46
              $region51: #{_lambda_.3} parent=43 // loop_exit
                _
            $region44: #{_lambda_.3} parent=35 // pred_fallthru
              _
          $region36: #{_lambda_.3} parent=31 // pred_fallthru
            _
          %198 = vnop
        $region32: #{_lambda_.3} parent=27 // pred_fallthru
          _
      $region28: #{_lambda_.3} parent=5 // pred_fallthru
        _
      %p199 = scmp.le.s32.totalorder 1, %s10
      %p200 = scmp.lt.s32.totalorder %s10, 3
      %p201 = pnand %p199, %p200
      %p202 = pneg %p201
      // Predicated region
      $region67: #{_lambda_.3} parent=5 // pred_check
        _
      $region68: #{_lambda_.3} parent=5 // pred_check_branch
        %204 = sbr.rel (%p201) target = $region70
      $region69: #{_lambda_.3} parent=5 // pred_region
        %s205 = ssub.s32 %s10, 1
        %s206 = sand.u32 %s86, 1
        %s207 = sand.u32 %s86, 1
        %s208 = smul.addr %s207, 16
        %s209 = scalar_lea.vmem [#allocation2], %s208
        // Predicated region
        $region71: #{_lambda_.3} parent=69 // pred_check
          %p210 = pneg %p99
        $region72: #{_lambda_.3} parent=69 // pred_check_branch
          %212 = sbr.rel (%p210) target = $region74
        $region73: #{_lambda_.3} parent=69 // pred_region
          _
        $region74: #{_lambda_.3} parent=69 // pred_fallthru
          _
        %p213 = pneg %p31
        %p214 = pneg %p28
        %p215 = pneg %p52
        %p216 = pneg %p49
        %p217 = pneg %p73
        %p218 = pneg %p70
        %s219 = sand.u32 %s86, 1
        %s220 = sand.u32 %s86, 1
        %s221 = smul.addr %s220, 16
        %s222 = scalar_lea.vmem [#allocation2], %s221
        %p223 = pneg %p99
        %p224 = pneg %p96
        %p225 = pneg %p125
        %p226 = pneg %p122
        %s227 = sand.u32 %s112, 1
        %s228 = sand.u32 %s112, 1
        %s229 = smul.addr %s228, 64
        %s230 = scalar_lea.vmem [#allocation3], %s229
        %s231 = smul.u32 2, %s15
        %s232 = smul.u32 2, %s15
        %v234 = vld [vmem:[%s0] sm:$0xf]
        %v235 = vld [vmem:[%s0 + $0x4] sm:$0xf]
        %v236 = vld [vmem:[%s0 + $0x8] sm:$0xf]
        %v237 = vld [vmem:[%s0 + $0xc] sm:$0xf]
        %v238 = vld [vmem:[%s209] sm:$0xff]
        %v239 = vld [vmem:[%s209 + $0x8] sm:$0xff]
        %v244 = vunpack.c.l.b16 %v234
        %v245 = vunpack.c.l.b16 %v235
        %v246 = vunpack.c.l.b16 %v236
        %v247 = vunpack.c.l.b16 %v237
        %v248 = vpack.c.b16 %v245, %v244
        %v249 = vpack.c.b16 %v247, %v246
        %v252 = vunpack.c.l.b16 %v238
        %v253 = vunpack.c.h.b16 %v238
        %v254 = vunpack.c.l.b16 %v239
        %v255 = vunpack.c.h.b16 %v239
        %v256 = vpack.c.b16 %v254, %v252
        %v257 = vpack.c.b16 %v255, %v253
        %vm260 = vcmask 130048
        %v262 = vsel %vm260, %v248, 0
        %v265 = vsel %vm260, %v249, 0
        %267 = vmatprep.subr.bf16.mxu0 %v257
        %268 = vmatpush1.bf16.msra.mxu0 %v256
        %269 = vmatprep.subr.bf16.mxu0 0
        %270 = vmatpush1.bf16.msra.mxu0 0
        %271 = vmatprep.subr.bf16.mxu0 0
        %272 = vmatpush1.bf16.msra.mxu0 0
        %273 = vmatprep.subr.bf16.mxu0 0
        %274 = vmatpush1.bf16.msra.mxu0 0
        %275 = vmatprep.subr.bf16.mxu0 0
        %276 = vmatpush1.bf16.msra.mxu0 0
        %277 = vmatprep.subr.bf16.mxu0 0
        %278 = vmatpush1.bf16.msra.mxu0 0
        %279 = vmatprep.subr.bf16.mxu0 0
        %280 = vmatpush1.bf16.msra.mxu0 0
        %281 = vmatprep.subr.bf16.mxu0 0
        %282 = vmatpush1.bf16.msra.mxu0 0
        %283 = vmatprep.subr.bf16.mxu0 0
        %284 = vmatpush1.bf16.msra.mxu0 0
        %285 = vmatprep.subr.bf16.mxu0 0
        %286 = vmatpush1.bf16.msra.mxu0 0
        %287 = vmatprep.subr.bf16.mxu0 0
        %288 = vmatpush1.bf16.msra.mxu0 0
        %289 = vmatprep.subr.bf16.mxu0 0
        %290 = vmatpush1.bf16.msra.mxu0 0
        %291 = vmatprep.subr.bf16.mxu0 0
        %292 = vmatpush1.bf16.msra.mxu0 0
        %293 = vmatprep.subr.bf16.mxu0 0
        %294 = vmatpush1.bf16.msra.mxu0 0
        %295 = vmatprep.subr.bf16.mxu0 0
        %296 = vmatpush1.bf16.msra.mxu0 0
        %297 = vmatprep.subr.bf16.mxu0 0
        %298 = vmatpush1.bf16.msra.mxu0 0
        %299 = vmatprep.mubr.bf16.mxu0 0
        %300 = vmatmul.mubr.bf16.gmra.mrb[0].mxu0 %v262
        %v301 = vpop.f32.mrb[0].mxu0
        %v302 = vadd.f32 0.0, %v301
        %v303 = vpop.f32.mrb[0].mxu0
        %v304 = vadd.f32 0.0, %v303
        %v305 = vpop.f32.mrb[0].mxu0
        %v306 = vadd.f32 0.0, %v305
        %v307 = vpop.f32.mrb[0].mxu0
        %v308 = vadd.f32 0.0, %v307
        %309 = vmatprep.mubr.bf16.mxu0 0
        %310 = vmatmul.mubr.bf16.gmra.mrb[0].mxu0 %v265
        %v311 = vpop.f32.mrb[0].mxu0
        %v312 = vadd.f32 0.0, %v311
        %v313 = vpop.f32.mrb[0].mxu0
        %v314 = vadd.f32 0.0, %v313
        %v315 = vpop.f32.mrb[0].mxu0
        %v316 = vadd.f32 0.0, %v315
        %v317 = vpop.f32.mrb[0].mxu0
        %v318 = vadd.f32 0.0, %v317
        %319 = vdwg.mxu0
        %v320 = vld [vmem:[%s1] sm:$0xff]
        %v321 = vld [vmem:[%s1 + $0x8] sm:$0xff]
        %v322 = vld [vmem:[%s1 + $0x10] sm:$0xff]
        %v323 = vld [vmem:[%s1 + $0x18] sm:$0xff]
        %325 = vset.pattern.permute.xlu0 0
        %326 = vperm.xlu0 %325, %v320
        %v327 = vpop.permute.xlu0 %326
        %330 = vset.pattern.permute.xlu0 0
        %331 = vperm.xlu0 %330, %v321
        %v332 = vpop.permute.xlu0 %331
        %335 = vset.pattern.permute.xlu0 0
        %336 = vperm.xlu0 %335, %v322
        %v337 = vpop.permute.xlu0 %336
        %340 = vset.pattern.permute.xlu0 0
        %341 = vperm.xlu0 %340, %v323
        %v342 = vpop.permute.xlu0 %341
        %v344 = vmul.f32 %v302, %v327
        %v345 = vmul.f32 %v304, %v327
        %v346 = vmul.f32 %v306, %v332
        %v347 = vmul.f32 %v308, %v332
        %v348 = vmul.f32 %v312, %v337
        %v349 = vmul.f32 %v314, %v337
        %v350 = vmul.f32 %v316, %v342
        %v351 = vmul.f32 %v318, %v342
        %v352 = vld [vmem:[%s2] sm:$0xff]
        %v353 = vld [vmem:[%s2 + $0x8] sm:$0xff]
        %v354 = vld [vmem:[%s2 + $0x10] sm:$0xff]
        %v355 = vld [vmem:[%s2 + $0x18] sm:$0xff]
        %357 = vset.pattern.permute.xlu0 0
        %358 = vperm.xlu0 %357, %v352
        %v359 = vpop.permute.xlu0 %358
        %362 = vset.pattern.permute.xlu0 0
        %363 = vperm.xlu0 %362, %v353
        %v364 = vpop.permute.xlu0 %363
        %367 = vset.pattern.permute.xlu0 0
        %368 = vperm.xlu0 %367, %v354
        %v369 = vpop.permute.xlu0 %368
        %372 = vset.pattern.permute.xlu0 0
        %373 = vperm.xlu0 %372, %v355
        %v374 = vpop.permute.xlu0 %373
        %v376 = vadd.f32 %v344, %v359
        %v377 = vadd.f32 %v345, %v359
        %v378 = vadd.f32 %v346, %v364
        %v379 = vadd.f32 %v347, %v364
        %v380 = vadd.f32 %v348, %v369
        %v381 = vadd.f32 %v349, %v369
        %v382 = vadd.f32 %v350, %v374
        %v383 = vadd.f32 %v351, %v374
        %vm384 = vcmp.ge.f32.partialorder %v376, 0.0
        %vm385 = vcmp.ge.f32.partialorder %v377, 0.0
        %vm386 = vcmp.ge.f32.partialorder %v378, 0.0
        %vm387 = vcmp.ge.f32.partialorder %v379, 0.0
        %vm388 = vcmp.ge.f32.partialorder %v380, 0.0
        %vm389 = vcmp.ge.f32.partialorder %v381, 0.0
        %vm390 = vcmp.ge.f32.partialorder %v382, 0.0
        %vm391 = vcmp.ge.f32.partialorder %v383, 0.0
        %v392 = vmul.f32 %v376, 0.01
        %v393 = vmul.f32 %v377, 0.01
        %v394 = vmul.f32 %v378, 0.01
        %v395 = vmul.f32 %v379, 0.01
        %v396 = vmul.f32 %v380, 0.01
        %v397 = vmul.f32 %v381, 0.01
        %v398 = vmul.f32 %v382, 0.01
        %v399 = vmul.f32 %v383, 0.01
        %v400 = vsel %vm384, %v376, %v392
        %v401 = vsel %vm385, %v377, %v393
        %v402 = vsel %vm386, %v378, %v394
        %v403 = vsel %vm387, %v379, %v395
        %v404 = vsel %vm388, %v380, %v396
        %v405 = vsel %vm389, %v381, %v397
        %v406 = vsel %vm390, %v382, %v398
        %v407 = vsel %vm391, %v383, %v399
        %408 = vst [vmem:[%s230] sm:$0xff] %v400
        %409 = vst [vmem:[%s230 + $0x8] sm:$0xff] %v401
        %410 = vst [vmem:[%s230 + $0x10] sm:$0xff] %v402
        %411 = vst [vmem:[%s230 + $0x18] sm:$0xff] %v403
        %412 = vst [vmem:[%s230 + $0x20] sm:$0xff] %v404
        %413 = vst [vmem:[%s230 + $0x28] sm:$0xff] %v405
        %414 = vst [vmem:[%s230 + $0x30] sm:$0xff] %v406
        %415 = vst [vmem:[%s230 + $0x38] sm:$0xff] %v407
        %s416 = sand.u32 %s112, 1
        %s417 = sand.u32 %s112, 1
        %s418 = smul.addr %s417, 64
        %s419 = scalar_lea.vmem [#allocation3], %s418
        // Predicated region
        $region75: #{_lambda_.3} parent=69 // pred_check
          %p420 = pneg %p122
        $region76: #{_lambda_.3} parent=69 // pred_check_branch
          %422 = sbr.rel (%p420) target = $region78
        $region77: #{_lambda_.3} parent=69 // pred_region
          %s423 = smul.u32 2, %s15
          %s424 = smul.addr %s423, 8
          %s425 = scalar_lea.vmem %s4, %s424
          // Predicated region
          $region79: #{_lambda_.3} parent=77 // pred_check
            _
          $region80: #{_lambda_.3} parent=77 // pred_check_branch
            %427 = sbr.rel (0) target = $region82
          $region81: #{_lambda_.3} parent=77 // pred_region
            // Predicated region
            $region83: #{_lambda_.3} parent=81 // pred_check
              _
            $region84: #{_lambda_.3} parent=81 // pred_check_branch
              %429 = sbr.rel (0) target = $region86
            $region85: #{_lambda_.3} parent=81 // pred_region
              loop: start=0, step=1, limit=1
              $region87: #{_lambda_.3} parent=85 // loop_pre_header
                _
              $region88: #{_lambda_.3} parent=85 // loop_header
                %s431 = sphi 0, %s435
                %p432 = scmp.ge.s32.totalorder %s431, 1
                %s436 = sphi %s419, %s419
                %s437 = sphi %s425, %s425
              $region89: #{_lambda_.3} parent=85 // loop_header_branch
                %434 = sbr.rel (%p432) target = $region93
              $region90: #{_lambda_.3} parent=85 // loop_body
                %v438 = vld [vmem:[%s436] sm:$0xff]
                %439 = vst [vmem:[%s437] sm:$0xff] %v438
                %v440 = vld [vmem:[%s436 + $0x8] sm:$0xff]
                %441 = vst [vmem:[%s437 + $0x8] sm:$0xff] %v440
                %v442 = vld [vmem:[%s436 + $0x10] sm:$0xff]
                %443 = vst [vmem:[%s437 + $0x20] sm:$0xff] %v442
                %v444 = vld [vmem:[%s436 + $0x18] sm:$0xff]
                %445 = vst [vmem:[%s437 + $0x28] sm:$0xff] %v444
                %v446 = vld [vmem:[%s436 + $0x20] sm:$0xff]
                %447 = vst [vmem:[%s437 + $0x40] sm:$0xff] %v446
                %v448 = vld [vmem:[%s436 + $0x28] sm:$0xff]
                %449 = vst [vmem:[%s437 + $0x48] sm:$0xff] %v448
                %v450 = vld [vmem:[%s436 + $0x30] sm:$0xff]
                %451 = vst [vmem:[%s437 + $0x60] sm:$0xff] %v450
                %v452 = vld [vmem:[%s436 + $0x38] sm:$0xff]
                %453 = vst [vmem:[%s437 + $0x68] sm:$0xff] %v452
              $region91: #{_lambda_.3} parent=85 // loop_footer
                %s435 = sadd.s32 1, %s431
              $region92: #{_lambda_.3} parent=85 // loop_footer_branch
                %430 = sbr.rel target = $region88
              $region93: #{_lambda_.3} parent=85 // loop_exit
                _
            $region86: #{_lambda_.3} parent=81 // pred_fallthru
              _
            // Predicated region
            $region94: #{_lambda_.3} parent=81 // pred_check
              _
            $region95: #{_lambda_.3} parent=81 // pred_check_branch
              %455 = sbr.rel target = $region97
            $region96: #{_lambda_.3} parent=81 // pred_region
              _
            $region97: #{_lambda_.3} parent=81 // pred_fallthru
              _
          $region82: #{_lambda_.3} parent=77 // pred_fallthru
            _
          %456 = vnop
        $region78: #{_lambda_.3} parent=69 // pred_fallthru
          _
      $region70: #{_lambda_.3} parent=5 // pred_fallthru
        _
      %p457 = scmp.le.s32.totalorder 2, %s10
      // Predicated region
      $region98: #{_lambda_.3} parent=5 // pred_check
        %p458 = pneg %p457
      $region99: #{_lambda_.3} parent=5 // pred_check_branch
        %460 = sbr.rel (%p458) target = $region101
      $region100: #{_lambda_.3} parent=5 // pred_region
        %s461 = ssub.s32 %s10, 2
        // Predicated region
        $region102: #{_lambda_.3} parent=100 // pred_check
          %p462 = pneg %p128
        $region103: #{_lambda_.3} parent=100 // pred_check_branch
          %464 = sbr.rel (%p462) target = $region105
        $region104: #{_lambda_.3} parent=100 // pred_region
          %s465 = sand.u32 %s113, 1
          %s466 = sand.u32 %s113, 1
          %s467 = smul.addr %s466, 64
          %s468 = scalar_lea.vmem [#allocation3], %s467
        $region105: #{_lambda_.3} parent=100 // pred_fallthru
          _
      $region101: #{_lambda_.3} parent=5 // pred_fallthru
        _
    $region6: #{_lambda_.3} parent=1 // loop_footer
      %s14 = sadd.s32 1, %s10
    $region7: #{_lambda_.3} parent=1 // loop_footer_branch
      %9 = sbr.rel target = $region3
    $region8: #{_lambda_.3} parent=1 // loop_exit
      _

// kernel: _lambda_.2
$region0: #{_lambda_.2}
  #allocation0 [shape = 'u32[]', space=smem, size = 0x4, offset = 0x4, fixed_abs, tag = 'smem constant byte address 0x4 - core index']
  #allocation1 [shape = 'u32[144,128]{1,0:T(1,128)}', space=vmem, size = 0x12000, scoped, tag = 'internal scratch']
  %s0 = inlined_call_operand.vmem [shape: bf16[32,16], index: 0, kind: input, shape index: {}]
  %s1 = inlined_call_operand.vmem [shape: bf16[16,512], index: 1, kind: input, shape index: {}]
  %s2 = inlined_call_operand.vmem [shape: f32[32,1], index: 2, kind: output, shape index: {0}]
  %s3 = inlined_call_operand.vmem [shape: f32[32,1], index: 3, kind: output, shape index: {1}]
  %4 = xla_tuple %s2, %s3
  %s5 = sld [smem:[#allocation0]]
  $region91: #{_lambda_.2} parent=0
    _
  %s7 = ssub.s32 1, %s5
  %s8 = scalar_select 0, %s7, %s5
  $region1: #{_lambda_.2} parent=0
    #allocation2 [shape = 'u8[16384]{0}', space=vmem, size = 0x4000, scoped, tag = 'input window, operand 1']
    loop: start=0, step=1, limit=4
    $region2: #{_lambda_.2} parent=1 // loop_pre_header
      _
    $region3: #{_lambda_.2} parent=1 // loop_header
      %s10 = sphi 0, %s14
      %p11 = scmp.ge.s32.totalorder %s10, 4
      %s18 = sphi 0, %s18
      %s20 = sphi 0, %s18
      %s21 = sphi 0, %s20
      %s35 = sphi 0, %s21
      %s41 = sphi 0, %s43
      %s44 = sphi 0, %s41
      %s45 = sphi 0, %s44
      %s61 = sphi 0, %s45
      %s65 = sphi 0, %s65
      %s67 = sphi 0, %s65
      %s68 = sphi 0, %s67
      %s82 = sphi 0, %s68
      %s86 = sphi 0, %s86
      %s88 = sphi 0, %s86
      %s89 = sphi 0, %s88
      %s103 = sphi 0, %s89
    $region4: #{_lambda_.2} parent=1 // loop_header_branch
      %13 = sbr.rel (%p11) target = $region8
    $region5: #{_lambda_.2} parent=1 // loop_body
      %s15 = ssub.s32 %s10, 1
      %s16 = ssub.s32 %s10, 2
      %s17 = sadd.s32 %s10, 1
      %s19 = sadd.s32 %s18, 1
      %p22 = scmp.eq.s32.totalorder %s10, 1
      %p23 = scmp.ne.s32.totalorder %s18, %s20
      %p24 = scmp.eq.s32.totalorder %s10, 0
      %p25 = por %p23, %p24
      %p26 = scmp.ne.s32.totalorder %s18, %s20
      %p27 = scmp.eq.s32.totalorder %s15, 1
      %p28 = por %p26, %p27
      %p29 = scmp.ne.s32.totalorder %s20, %s21
      %p30 = scmp.eq.s32.totalorder %s15, 0
      %p31 = por %p29, %p30
      %p32 = scmp.ne.s32.totalorder %s20, %s21
      %p33 = scmp.eq.s32.totalorder %s16, 1
      %p34 = por %p32, %p33
      %p36 = scmp.ne.s32.totalorder %s21, %s35
      %p37 = scmp.eq.s32.totalorder %s16, 0
      %p38 = por %p36, %p37
      %s39 = ssub.s32 %s10, %s17
      %p40 = scmp.eq.s32.totalorder %s39, 0
      %s42 = sadd.s32 %s41, 1
      %s43 = scalar_select %p40, %s41, %s42
      %p46 = pneg %p40
      %p47 = scmp.eq.s32.totalorder %s10, 1
      %p48 = por %p46, %p47
      %p49 = scmp.ne.s32.totalorder %s41, %s44
      %p50 = scmp.eq.s32.totalorder %s10, 0
      %p51 = por %p49, %p50
      %p52 = scmp.ne.s32.totalorder %s41, %s44
      %p53 = scmp.eq.s32.totalorder %s15, 1
      %p54 = por %p52, %p53
      %p55 = scmp.ne.s32.totalorder %s44, %s45
      %p56 = scmp.eq.s32.totalorder %s15, 0
      %p57 = por %p55, %p56
      %p58 = scmp.ne.s32.totalorder %s44, %s45
      %p59 = scmp.eq.s32.totalorder %s16, 1
      %p60 = por %p58, %p59
      %p62 = scmp.ne.s32.totalorder %s45, %s61
      %p63 = scmp.eq.s32.totalorder %s16, 0
      %p64 = por %p62, %p63
      %s66 = sadd.s32 %s65, 1
      %p69 = scmp.eq.s32.totalorder %s10, 1
      %p70 = scmp.ne.s32.totalorder %s65, %s67
      %p71 = scmp.eq.s32.totalorder %s10, 0
      %p72 = por %p70, %p71
      %p73 = scmp.ne.s32.totalorder %s65, %s67
      %p74 = scmp.eq.s32.totalorder %s15, 1
      %p75 = por %p73, %p74
      %p76 = scmp.ne.s32.totalorder %s67, %s68
      %p77 = scmp.eq.s32.totalorder %s15, 0
      %p78 = por %p76, %p77
      %p79 = scmp.ne.s32.totalorder %s67, %s68
      %p80 = scmp.eq.s32.totalorder %s16, 1
      %p81 = por %p79, %p80
      %p83 = scmp.ne.s32.totalorder %s68, %s82
      %p84 = scmp.eq.s32.totalorder %s16, 0
      %p85 = por %p83, %p84
      %s87 = sadd.s32 %s86, 1
      %p90 = scmp.eq.s32.totalorder %s10, 1
      %p91 = scmp.ne.s32.totalorder %s86, %s88
      %p92 = scmp.eq.s32.totalorder %s10, 0
      %p93 = por %p91, %p92
      %p94 = scmp.ne.s32.totalorder %s86, %s88
      %p95 = scmp.eq.s32.totalorder %s15, 1
      %p96 = por %p94, %p95
      %p97 = scmp.ne.s32.totalorder %s88, %s89
      %p98 = scmp.eq.s32.totalorder %s15, 0
      %p99 = por %p97, %p98
      %p100 = scmp.ne.s32.totalorder %s88, %s89
      %p101 = scmp.eq.s32.totalorder %s16, 1
      %p102 = por %p100, %p101
      %p104 = scmp.ne.s32.totalorder %s89, %s103
      %p105 = scmp.eq.s32.totalorder %s16, 0
      %p106 = por %p104, %p105
      %p107 = scmp.le.s32.totalorder 1, %s10
      %p108 = scmp.lt.s32.totalorder %s10, 3
      %p109 = pnand %p107, %p108
      %p110 = pneg %p109
      // Predicated region
      $region9: #{_lambda_.2} parent=5 // pred_check
        _
      $region10: #{_lambda_.2} parent=5 // pred_check_branch
        %112 = sbr.rel (%p109) target = $region12
      $region11: #{_lambda_.2} parent=5 // pred_region
        %s113 = ssub.s32 %s10, 1
        // Predicated region
        $region13: #{_lambda_.2} parent=11 // pred_check
          %p114 = pneg %p31
        $region14: #{_lambda_.2} parent=11 // pred_check_branch
          %116 = sbr.rel (%p114) target = $region16
        $region15: #{_lambda_.2} parent=11 // pred_region
          _
        $region16: #{_lambda_.2} parent=11 // pred_fallthru
          _
      $region12: #{_lambda_.2} parent=5 // pred_fallthru
        _
      %p117 = scmp.lt.s32.totalorder %s10, 2
      // Predicated region
      $region17: #{_lambda_.2} parent=5 // pred_check
        %p118 = pneg %p117
      $region18: #{_lambda_.2} parent=5 // pred_check_branch
        %120 = sbr.rel (%p118) target = $region20
      $region19: #{_lambda_.2} parent=5 // pred_region
        // Predicated region
        $region21: #{_lambda_.2} parent=19 // pred_check
          %p121 = pneg %p51
        $region22: #{_lambda_.2} parent=19 // pred_check_branch
          %123 = sbr.rel (%p121) target = $region24
        $region23: #{_lambda_.2} parent=19 // pred_region
          %s124 = sand.u32 %s41, 1
          %s125 = sand.u32 %s41, 1
          %s126 = smul.addr %s125, 16
          %s127 = scalar_lea.vmem [#allocation2], %s126
          %s128 = smul.u32 2, %s10
          %s129 = smul.addr %s128, 4
          %s130 = scalar_lea.vmem %s1, %s129
          // Predicated region
          $region25: #{_lambda_.2} parent=23 // pred_check
            _
          $region26: #{_lambda_.2} parent=23 // pred_check_branch
            %132 = sbr.rel (0) target = $region28
          $region27: #{_lambda_.2} parent=23 // pred_region
            // Predicated region
            $region29: #{_lambda_.2} parent=27 // pred_check
              _
            $region30: #{_lambda_.2} parent=27 // pred_check_branch
              %134 = sbr.rel (0) target = $region32
            $region31: #{_lambda_.2} parent=27 // pred_region
              // Predicated region
              $region44: #{_lambda_.2} parent=31 // pred_check
                _
              $region45: #{_lambda_.2} parent=31 // pred_check_branch
                %151 = sbr.rel (0) target = $region47
              $region46: #{_lambda_.2} parent=31 // pred_region
                loop: start=0, step=1, limit=1
                $region48: #{_lambda_.2} parent=46 // loop_pre_header
                  _
                $region49: #{_lambda_.2} parent=46 // loop_header
                  %s153 = sphi 0, %s157
                  %p154 = scmp.ge.s32.totalorder %s153, 1
                  %s158 = sphi %s130, %s130
                  %s159 = sphi %s127, %s127
                $region50: #{_lambda_.2} parent=46 // loop_header_branch
                  %156 = sbr.rel (%p154) target = $region54
                $region51: #{_lambda_.2} parent=46 // loop_body
                  %v160 = vld [vmem:[%s158] sm:$0xff]
                  %161 = vst [vmem:[%s159] sm:$0xff] %v160
                  %v162 = vld [vmem:[%s158 + $0x10] sm:$0xff]
                  %163 = vst [vmem:[%s159 + $0x8] sm:$0xff] %v162
                $region52: #{_lambda_.2} parent=46 // loop_footer
                  %s157 = sadd.s32 1, %s153
                $region53: #{_lambda_.2} parent=46 // loop_footer_branch
                  %152 = sbr.rel target = $region49
                $region54: #{_lambda_.2} parent=46 // loop_exit
                  _
              $region47: #{_lambda_.2} parent=31 // pred_fallthru
                _
              // Predicated region
              $region55: #{_lambda_.2} parent=31 // pred_check
                _
              $region56: #{_lambda_.2} parent=31 // pred_check_branch
                %165 = sbr.rel target = $region58
              $region57: #{_lambda_.2} parent=31 // pred_region
                _
              $region58: #{_lambda_.2} parent=31 // pred_fallthru
                _
            $region32: #{_lambda_.2} parent=27 // pred_fallthru
              _
            // Predicated region
            $region33: #{_lambda_.2} parent=27 // pred_check
              _
            $region34: #{_lambda_.2} parent=27 // pred_check_branch
              %136 = sbr.rel target = $region36
            $region35: #{_lambda_.2} parent=27 // pred_region
              loop: start=0, step=1, limit=1
              $region37: #{_lambda_.2} parent=35 // loop_pre_header
                _
              $region38: #{_lambda_.2} parent=35 // loop_header
                %s139 = sphi 0, %s143
                %p140 = scmp.ge.s32.totalorder %s139, 1
                %s144 = sphi %s130, %s130
                %s145 = sphi %s127, %s127
              $region39: #{_lambda_.2} parent=35 // loop_header_branch
                %142 = sbr.rel (%p140) target = $region43
              $region40: #{_lambda_.2} parent=35 // loop_body
                %v146 = vld [vmem:[%s144] sm:$0xff]
                %147 = vst [vmem:[%s145] sm:$0xff] %v146
                %v148 = vld [vmem:[%s144 + $0x10] sm:$0xff]
                %149 = vst [vmem:[%s145 + $0x8] sm:$0xff] %v148
              $region41: #{_lambda_.2} parent=35 // loop_footer
                %s143 = sadd.s32 1, %s139
              $region42: #{_lambda_.2} parent=35 // loop_footer_branch
                %138 = sbr.rel target = $region38
              $region43: #{_lambda_.2} parent=35 // loop_exit
                _
            $region36: #{_lambda_.2} parent=27 // pred_fallthru
              _
          $region28: #{_lambda_.2} parent=23 // pred_fallthru
            _
          %166 = vnop
        $region24: #{_lambda_.2} parent=19 // pred_fallthru
          _
      $region20: #{_lambda_.2} parent=5 // pred_fallthru
        _
      %p167 = scmp.le.s32.totalorder 1, %s10
      %p168 = scmp.lt.s32.totalorder %s10, 3
      %p169 = pnand %p167, %p168
      %p170 = pneg %p169
      // Predicated region
      $region59: #{_lambda_.2} parent=5 // pred_check
        _
      $region60: #{_lambda_.2} parent=5 // pred_check_branch
        %172 = sbr.rel (%p169) target = $region62
      $region61: #{_lambda_.2} parent=5 // pred_region
        %s173 = ssub.s32 %s10, 1
        %s174 = sand.u32 %s44, 1
        %s175 = sand.u32 %s44, 1
        %s176 = smul.addr %s175, 16
        %s177 = scalar_lea.vmem [#allocation2], %s176
        // Predicated region
        $region63: #{_lambda_.2} parent=61 // pred_check
          %p178 = pneg %p57
        $region64: #{_lambda_.2} parent=61 // pred_check_branch
          %180 = sbr.rel (%p178) target = $region66
        $region65: #{_lambda_.2} parent=61 // pred_region
          _
        $region66: #{_lambda_.2} parent=61 // pred_fallthru
          _
        %p181 = pneg %p31
        %p182 = pneg %p28
        %s183 = sand.u32 %s44, 1
        %s184 = sand.u32 %s44, 1
        %s185 = smul.addr %s184, 16
        %s186 = scalar_lea.vmem [#allocation2], %s185
        %p187 = pneg %p57
        %p188 = pneg %p54
        %p189 = pneg %p78
        %p190 = pneg %p75
        %p191 = pneg %p99
        %p192 = pneg %p96
        %s193 = smul.u32 2, %s15
        %p195 = scmp.eq.s32.totalorder %s15, 0
        // Predicated region
        $region67: #{_lambda_.2} parent=61 // pred_check
          %p196 = pneg %p195
        $region68: #{_lambda_.2} parent=61 // pred_check_branch
          %198 = sbr.rel (%p196) target = $region70
        $region69: #{_lambda_.2} parent=61 // pred_region
          %vm199 = vcmask 7168
          %200 = vst.msk [vmem:[%s2] sm:$0xff] %vm199, 0.0
          %201 = vst.msk [vmem:[%s2 + $0x8] sm:$0xff] %vm199, 0.0
          %202 = vst.msk [vmem:[%s2 + $0x10] sm:$0xff] %vm199, 0.0
          %203 = vst.msk [vmem:[%s2 + $0x18] sm:$0xff] %vm199, 0.0
          %204 = vst.msk [vmem:[%s3] sm:$0xff] %vm199, 0.0
          %205 = vst.msk [vmem:[%s3 + $0x8] sm:$0xff] %vm199, 0.0
          %206 = vst.msk [vmem:[%s3 + $0x10] sm:$0xff] %vm199, 0.0
          %207 = vst.msk [vmem:[%s3 + $0x18] sm:$0xff] %vm199, 0.0
        $region70: #{_lambda_.2} parent=61 // pred_fallthru
          _
        %v208 = vld [vmem:[%s0] sm:$0xf]
        %v209 = vld [vmem:[%s0 + $0x4] sm:$0xf]
        %v210 = vld [vmem:[%s0 + $0x8] sm:$0xf]
        %v211 = vld [vmem:[%s0 + $0xc] sm:$0xf]
        %v212 = vld [vmem:[%s177] sm:$0xff]
        %v213 = vld [vmem:[%s177 + $0x8] sm:$0xff]
        %v218 = vunpack.c.l.b16 %v208
        %v219 = vunpack.c.l.b16 %v209
        %v220 = vunpack.c.l.b16 %v210
        %v221 = vunpack.c.l.b16 %v211
        %v222 = vpack.c.b16 %v219, %v218
        %v223 = vpack.c.b16 %v221, %v220
        %v226 = vunpack.c.l.b16 %v212
        %v227 = vunpack.c.h.b16 %v212
        %v228 = vunpack.c.l.b16 %v213
        %v229 = vunpack.c.h.b16 %v213
        %v230 = vpack.c.b16 %v228, %v226
        %v231 = vpack.c.b16 %v229, %v227
        %vm234 = vcmask 130048
        %v236 = vsel %vm234, %v222, 0
        %v239 = vsel %vm234, %v223, 0
        %241 = vmatprep.subr.bf16.mxu0 %v231
        %242 = vmatpush1.bf16.msra.mxu0 %v230
        %243 = vmatprep.subr.bf16.mxu0 0
        %244 = vmatpush1.bf16.msra.mxu0 0
        %245 = vmatprep.subr.bf16.mxu0 0
        %246 = vmatpush1.bf16.msra.mxu0 0
        %247 = vmatprep.subr.bf16.mxu0 0
        %248 = vmatpush1.bf16.msra.mxu0 0
        %249 = vmatprep.subr.bf16.mxu0 0
        %250 = vmatpush1.bf16.msra.mxu0 0
        %251 = vmatprep.subr.bf16.mxu0 0
        %252 = vmatpush1.bf16.msra.mxu0 0
        %253 = vmatprep.subr.bf16.mxu0 0
        %254 = vmatpush1.bf16.msra.mxu0 0
        %255 = vmatprep.subr.bf16.mxu0 0
        %256 = vmatpush1.bf16.msra.mxu0 0
        %257 = vmatprep.subr.bf16.mxu0 0
        %258 = vmatpush1.bf16.msra.mxu0 0
        %259 = vmatprep.subr.bf16.mxu0 0
        %260 = vmatpush1.bf16.msra.mxu0 0
        %261 = vmatprep.subr.bf16.mxu0 0
        %262 = vmatpush1.bf16.msra.mxu0 0
        %263 = vmatprep.subr.bf16.mxu0 0
        %264 = vmatpush1.bf16.msra.mxu0 0
        %265 = vmatprep.subr.bf16.mxu0 0
        %266 = vmatpush1.bf16.msra.mxu0 0
        %267 = vmatprep.subr.bf16.mxu0 0
        %268 = vmatpush1.bf16.msra.mxu0 0
        %269 = vmatprep.subr.bf16.mxu0 0
        %270 = vmatpush1.bf16.msra.mxu0 0
        %271 = vmatprep.subr.bf16.mxu0 0
        %272 = vmatpush1.bf16.msra.mxu0 0
        %273 = vmatprep.mubr.bf16.mxu0 0
        %274 = vmatmul.mubr.bf16.gmra.mrb[0].mxu0 %v236
        %v275 = vpop.f32.mrb[0].mxu0
        %v276 = vadd.f32 0.0, %v275
        %v277 = vpop.f32.mrb[0].mxu0
        %v278 = vadd.f32 0.0, %v277
        %v279 = vpop.f32.mrb[0].mxu0
        %v280 = vadd.f32 0.0, %v279
        %v281 = vpop.f32.mrb[0].mxu0
        %v282 = vadd.f32 0.0, %v281
        %283 = vmatprep.mubr.bf16.mxu0 0
        %284 = vmatmul.mubr.bf16.gmra.mrb[0].mxu0 %v239
        %v285 = vpop.f32.mrb[0].mxu0
        %v286 = vadd.f32 0.0, %v285
        %v287 = vpop.f32.mrb[0].mxu0
        %v288 = vadd.f32 0.0, %v287
        %v289 = vpop.f32.mrb[0].mxu0
        %v290 = vadd.f32 0.0, %v289
        %v291 = vpop.f32.mrb[0].mxu0
        %v292 = vadd.f32 0.0, %v291
        %293 = vdwg.mxu0
        %v294 = vld [vmem:[%s2] sm:$0xff]
        %v295 = vld [vmem:[%s2 + $0x8] sm:$0xff]
        %v296 = vld [vmem:[%s2 + $0x10] sm:$0xff]
        %v297 = vld [vmem:[%s2 + $0x18] sm:$0xff]
        %v298 = vadd.f32 %v276, %v278
        %299 = vadd.xlane.f32.xlu0 %v298
        %v300 = vpop.xlane.xlu0 %299
        %v301 = vadd.f32 %v280, %v282
        %302 = vadd.xlane.f32.xlu0 %v301
        %v303 = vpop.xlane.xlu0 %302
        %v304 = vadd.f32 %v286, %v288
        %305 = vadd.xlane.f32.xlu0 %v304
        %v306 = vpop.xlane.xlu0 %305
        %v307 = vadd.f32 %v290, %v292
        %308 = vadd.xlane.f32.xlu0 %v307
        %v309 = vpop.xlane.xlu0 %308
        %v310 = vadd.f32 %v294, %v300
        %v311 = vadd.f32 %v295, %v303
        %v312 = vadd.f32 %v296, %v306
        %v313 = vadd.f32 %v297, %v309
        %vm314 = vcmask 7168
        %315 = vst.msk [vmem:[%s2] sm:$0xff] %vm314, %v310
        %316 = vst.msk [vmem:[%s2 + $0x8] sm:$0xff] %vm314, %v311
        %317 = vst.msk [vmem:[%s2 + $0x10] sm:$0xff] %vm314, %v312
        %318 = vst.msk [vmem:[%s2 + $0x18] sm:$0xff] %vm314, %v313
        %v319 = vld [vmem:[%s3] sm:$0xff]
        %v320 = vld [vmem:[%s3 + $0x8] sm:$0xff]
        %v321 = vld [vmem:[%s3 + $0x10] sm:$0xff]
        %v322 = vld [vmem:[%s3 + $0x18] sm:$0xff]
        %v323 = vmul.f32 %v276, %v276
        %v324 = vmul.f32 %v278, %v278
        %v325 = vmul.f32 %v280, %v280
        %v326 = vmul.f32 %v282, %v282
        %v327 = vmul.f32 %v286, %v286
        %v328 = vmul.f32 %v288, %v288
        %v329 = vmul.f32 %v290, %v290
        %v330 = vmul.f32 %v292, %v292
        %v331 = vadd.f32 %v323, %v324
        %332 = vadd.xlane.f32.xlu0 %v331
        %v333 = vpop.xlane.xlu0 %332
        %v334 = vadd.f32 %v325, %v326
        %335 = vadd.xlane.f32.xlu0 %v334
        %v336 = vpop.xlane.xlu0 %335
        %v337 = vadd.f32 %v327, %v328
        %338 = vadd.xlane.f32.xlu0 %v337
        %v339 = vpop.xlane.xlu0 %338
        %v340 = vadd.f32 %v329, %v330
        %341 = vadd.xlane.f32.xlu0 %v340
        %v342 = vpop.xlane.xlu0 %341
        %v343 = vadd.f32 %v319, %v333
        %v344 = vadd.f32 %v320, %v336
        %v345 = vadd.f32 %v321, %v339
        %v346 = vadd.f32 %v322, %v342
        %347 = vst.msk [vmem:[%s3] sm:$0xff] %vm314, %v343
        %348 = vst.msk [vmem:[%s3 + $0x8] sm:$0xff] %vm314, %v344
        %349 = vst.msk [vmem:[%s3 + $0x10] sm:$0xff] %vm314, %v345
        %350 = vst.msk [vmem:[%s3 + $0x18] sm:$0xff] %vm314, %v346
        // Predicated region
        $region71: #{_lambda_.2} parent=61 // pred_check
          %p351 = pneg %p75
        $region72: #{_lambda_.2} parent=61 // pred_check_branch
          %353 = sbr.rel (%p351) target = $region74
        $region73: #{_lambda_.2} parent=61 // pred_region
          _
        $region74: #{_lambda_.2} parent=61 // pred_fallthru
          _
        // Predicated region
        $region75: #{_lambda_.2} parent=61 // pred_check
          %p354 = pneg %p96
        $region76: #{_lambda_.2} parent=61 // pred_check_branch
          %356 = sbr.rel (%p354) target = $region78
        $region77: #{_lambda_.2} parent=61 // pred_region
          _
        $region78: #{_lambda_.2} parent=61 // pred_fallthru
          _
        // Predicated region
        $region79: #{_lambda_.2} parent=61 // pred_check
          %p357 = pneg %p75
        $region80: #{_lambda_.2} parent=61 // pred_check_branch
          %359 = sbr.rel (%p357) target = $region82
        $region81: #{_lambda_.2} parent=61 // pred_region
          _
        $region82: #{_lambda_.2} parent=61 // pred_fallthru
          _
        // Predicated region
        $region83: #{_lambda_.2} parent=61 // pred_check
          %p360 = pneg %p96
        $region84: #{_lambda_.2} parent=61 // pred_check_branch
          %362 = sbr.rel (%p360) target = $region86
        $region85: #{_lambda_.2} parent=61 // pred_region
          _
        $region86: #{_lambda_.2} parent=61 // pred_fallthru
          _
      $region62: #{_lambda_.2} parent=5 // pred_fallthru
        _
      %p363 = scmp.le.s32.totalorder 2, %s10
      // Predicated region
      $region87: #{_lambda_.2} parent=5 // pred_check
        %p364 = pneg %p363
      $region88: #{_lambda_.2} parent=5 // pred_check_branch
        %366 = sbr.rel (%p364) target = $region90
      $region89: #{_lambda_.2} parent=5 // pred_region
        %s367 = ssub.s32 %s10, 2
      $region90: #{_lambda_.2} parent=5 // pred_fallthru
        _
    $region6: #{_lambda_.2} parent=1 // loop_footer
      %s14 = sadd.s32 1, %s10
    $region7: #{_lambda_.2} parent=1 // loop_footer_branch
      %9 = sbr.rel target = $region3
    $region8: #{_lambda_.2} parent=1 // loop_exit
      _

</llo_original>
